<compile_context>
chip_gen: v7x
topology: tpu7x:2x2x1
jax: 0.10.0
libtpu: 0.0.40
codegen_flags: <defaults>
</compile_context>

<pallas_src>
import jax
import jax.numpy as jnp
from jax import lax
from jax.experimental import pallas as pl
from jax.experimental.pallas import tpu as pltpu


def _linear_permute_kernel(x_ref, w_ref, o_ref):
    # x_ref: (N, D), w_ref: (K, D), o_ref: (K, N)   (batch dim squeezed by BlockSpec)
    # out[k, n] = sum_d w[k, d] * x[n, d]  ==  (x @ W^T).T  ==  linear(x, W).permute(...)
    y = lax.dot_general(
        w_ref[...],
        x_ref[...],
        dimension_numbers=(((1,), (1,)), ((), ())),
        preferred_element_type=jnp.float32,
    )
    o_ref[...] = y.astype(o_ref.dtype)


def linear_permute(x, w):
    B, N, D = x.shape
    K, D2 = w.shape
    assert D == D2
    return pl.pallas_call(
        _linear_permute_kernel,
        out_shape=jax.ShapeDtypeStruct((B, K, N), x.dtype),
        grid=(B,),
        in_specs=[
            # Squeeze the batch dim out of the kernel view; full (N, D) block.
            pl.BlockSpec((pl.Squeezed(), N, D), lambda b: (b, 0, 0)),
            # Weight is the same full (K, D) block for every batch element.
            pl.BlockSpec((K, D), lambda b: (0, 0)),
        ],
        out_specs=pl.BlockSpec((pl.Squeezed(), K, N), lambda b: (b, 0, 0)),
        compiler_params=pltpu.CompilerParams(
            dimension_semantics=("parallel",),
        ),
    )(x, w)


if __name__ == "__main__":
    key = jax.random.PRNGKey(0)
    kx, kw = jax.random.split(key)

    # Input consistent with the module: x1 = torch.randn(1, 2, 2)
    x = jax.random.normal(kx, (1, 2, 2), dtype=jnp.float32)

    # Deterministic init for Linear(2, 2, bias=False).weight: U(-1/sqrt(D), 1/sqrt(D))
    D = 2
    bound = 1.0 / (D ** 0.5)
    w = jax.random.uniform(kw, (2, 2), dtype=jnp.float32, minval=-bound, maxval=bound)

    out = linear_permute(x, w)
    out = jax.block_until_ready(out)

    # Pure-JAX reference: F.linear(x, W).permute(0, 2, 1)
    ref = jnp.transpose(jnp.einsum("bnd,kd->bnk", x, w), (0, 2, 1))
    assert out.shape == (1, 2, 2)
    assert jnp.allclose(out, ref, atol=1e-6, rtol=1e-6)

    print("KERNEL_OK")
</pallas_src>

<mosaic_0001>
module attributes {stable_mosaic.version = 11 : i64} {
  func.func @_linear_permute_kernel(%arg0: i32, %arg1: memref<1x2x2xf32, #tpu.memory_space<vmem>>, %arg2: memref<2x2xf32, #tpu.memory_space<vmem>>, %arg3: memref<1x2x2xf32, #tpu.memory_space<vmem>>) attributes {dimension_semantics = [#tpu.dimension_semantics<parallel>], iteration_bounds = array<i64: 1>, scalar_prefetch = 0 : i64, scratch_operands = 0 : i64, tpu.core_type = #tpu.core_type<tc>, window_params = [{transform_indices = @transform_0, window_bounds = array<i64: 1, 2, 2>}, {pipeline_mode = #tpu.pipeline_mode<synchronous>, transform_indices = @transform_1, window_bounds = array<i64: 2, 2>}, {transform_indices = @transform_2, window_bounds = array<i64: 1, 2, 2>}]} {
    %c0 = arith.constant 0 : index
    %c0_0 = arith.constant 0 : index
    %0 = vector.load %arg2[%c0, %c0_0] : memref<2x2xf32, #tpu.memory_space<vmem>>, vector<2x2xf32>
    %c0_1 = arith.constant 0 : index
    %c0_2 = arith.constant 0 : index
    %c0_3 = arith.constant 0 : index
    %1 = vector.load %arg1[%c0_1, %c0_2, %c0_3] : memref<1x2x2xf32, #tpu.memory_space<vmem>>, vector<1x2x2xf32>
    %2 = vector.shape_cast %1 : vector<1x2x2xf32> to vector<2x2xf32>
    %cst = arith.constant dense<0.000000e+00> : vector<2x2xf32>
    %3 = tpu.matmul %0, %2, %cst {dimension_numbers = #tpu.dot_dimension_numbers<[1], [1], [0], [0], [0, 0, 1, 0], [], []>} : vector<2x2xf32>, vector<2x2xf32>, vector<2x2xf32> -> vector<2x2xf32>
    %c0_4 = arith.constant 0 : index
    %c0_5 = arith.constant 0 : index
    %c0_6 = arith.constant 0 : index
    %4 = vector.load %arg3[%c0_4, %c0_5, %c0_6] : memref<1x2x2xf32, #tpu.memory_space<vmem>>, vector<1x2x2xf32>
    %5 = vector.shape_cast %4 : vector<1x2x2xf32> to vector<2x2xf32>
    %6 = vector.shape_cast %3 : vector<2x2xf32> to vector<1x2x2xf32>
    tpu.vector_store %arg3[%c0_4, %c0_5, %c0_6], %6 {strides = array<i32>} : memref<1x2x2xf32, #tpu.memory_space<vmem>>, vector<1x2x2xf32>,
    return
  }
  func.func @transform_0(%arg0: i32) -> (i32, i32, i32) {
    %c0_i32 = arith.constant 0 : i32
    %c0_i32_0 = arith.constant 0 : i32
    %c0_i32_1 = arith.constant 0 : i32
    return %arg0, %c0_i32, %c0_i32_0 : i32, i32, i32
  }
  func.func @transform_1(%arg0: i32) -> (i32, i32) {
    %c0_i32 = arith.constant 0 : i32
    %c0_i32_0 = arith.constant 0 : i32
    %c0_i32_1 = arith.constant 0 : i32
    return %c0_i32, %c0_i32_0 : i32, i32
  }
  func.func @transform_2(%arg0: i32) -> (i32, i32, i32) {
    %c0_i32 = arith.constant 0 : i32
    %c0_i32_0 = arith.constant 0 : i32
    %c0_i32_1 = arith.constant 0 : i32
    return %arg0, %c0_i32, %c0_i32_0 : i32, i32, i32
  }
}

</mosaic_0001>

<llo_original>
// kernel: tpu_custom_call.1
$region0: #{tpu_custom_call.1}
  #allocation0 [shape = 'u32[]', space=smem, size = 0x4, offset = 0x4, fixed_abs, tag = 'smem constant byte address 0x4 - core index']
  #allocation1 [shape = 'u32[144,128]{1,0:T(1,128)}', space=vmem, size = 0x12000, scoped, tag = 'internal scratch']
  %s0 = inlined_call_operand.hbm [shape: f32[1,2,2], index: 0, kind: input, shape index: {}]
  %s1 = inlined_call_operand.vmem [shape: f32[2,2], index: 1, kind: input, shape index: {}]
  %s2 = inlined_call_operand.hbm [shape: f32[1,2,2], index: 2, kind: output, shape index: {}]
  %s3 = sld [smem:[#allocation0]]
  $region22: #{tpu_custom_call.1} parent=0
    _
  %s5 = ssub.s32 1, %s3
  %s6 = scalar_select 0, %s5, %s3
  $region1: #{tpu_custom_call.1} parent=0
    #allocation2 [shape = 'u8[1024]{0}', space=vmem, size = 0x400, scoped, tag = 'input window, operand 0, single buffered']
    #allocation3 [shape = 's32[1]{0}', space=sflag, size = 0x4, scoped, tag = 'scoped memory for tpu_custom_call.1']
    #allocation4 [shape = 's32[1]{0}', space=sflag, size = 0x4, scoped, tag = 'scoped memory for tpu_custom_call.1']
    #allocation5 [shape = 'u8[1024]{0}', space=vmem, size = 0x400, scoped, tag = 'output window, operand 0, single buffered']
    %7 = vsyncpa [#allocation3], 0
    %8 = vsyncpa [#allocation4], 0
    // Predicated region
    $region2: #{tpu_custom_call.1} parent=1 // pred_check
      _
    $region3: #{tpu_custom_call.1} parent=1 // pred_check_branch
      %10 = sbr.rel (0) target = $region5
    $region4: #{tpu_custom_call.1} parent=1 // pred_region
      %s12 = ssub.s32 32, 32
      %13 = vsyncadd [#allocation3], %s12
      %s15 = sshll.u32 [#allocation2], 4
      %s16 = int_to_ptr.vmem [resolvable:$true] %s15
      %18 = dma.hbm_to_vmem [thread:$0]  %s0, 32, %s16, [#allocation3]
    $region5: #{tpu_custom_call.1} parent=1 // pred_fallthru
      _
    // Predicated region
    $region6: #{tpu_custom_call.1} parent=1 // pred_check
      _
    $region7: #{tpu_custom_call.1} parent=1 // pred_check_branch
      %20 = sbr.rel (0) target = $region9
    $region8: #{tpu_custom_call.1} parent=1 // pred_region
      _
    $region9: #{tpu_custom_call.1} parent=1 // pred_fallthru
      _
    // Predicated region
    $region10: #{tpu_custom_call.1} parent=1 // pred_check
      _
    $region11: #{tpu_custom_call.1} parent=1 // pred_check_branch
      %22 = sbr.rel (0) target = $region13
    $region12: #{tpu_custom_call.1} parent=1 // pred_region
      %23 = dma.done [#allocation3], 32
    $region13: #{tpu_custom_call.1} parent=1 // pred_fallthru
      _
    %v24 = vld [vmem:[%s1] sm:$0x3]
    %v25 = vld [vmem:[#allocation2] sm:$0x3]
    %vm26 = vcmask 15360
    %v28 = vsel %vm26, %v24, 0
    %v31 = vsel %vm26, %v25, 0
    %33 = vmatprep.subr.mxu0 0.0
    %34 = vmatpush1.xpose.msra.mxu0 %v31
    %35 = vmatprep.subr.mxu0 0.0
    %36 = vmatpush1.xpose.msra.mxu0 0.0
    %37 = vmatprep.subr.mxu0 0.0
    %38 = vmatpush1.xpose.msra.mxu0 0.0
    %39 = vmatprep.subr.mxu0 0.0
    %40 = vmatpush1.xpose.msra.mxu0 0.0
    %41 = vmatprep.subr.mxu0 0.0
    %42 = vmatpush1.xpose.msra.mxu0 0.0
    %43 = vmatprep.subr.mxu0 0.0
    %44 = vmatpush1.xpose.msra.mxu0 0.0
    %45 = vmatprep.subr.mxu0 0.0
    %46 = vmatpush1.xpose.msra.mxu0 0.0
    %47 = vmatprep.subr.mxu0 0.0
    %48 = vmatpush1.xpose.msra.mxu0 0.0
    %49 = vmatprep.subr.mxu0 0.0
    %50 = vmatpush1.xpose.msra.mxu0 0.0
    %51 = vmatprep.subr.mxu0 0.0
    %52 = vmatpush1.xpose.msra.mxu0 0.0
    %53 = vmatprep.subr.mxu0 0.0
    %54 = vmatpush1.xpose.msra.mxu0 0.0
    %55 = vmatprep.subr.mxu0 0.0
    %56 = vmatpush1.xpose.msra.mxu0 0.0
    %57 = vmatprep.subr.mxu0 0.0
    %58 = vmatpush1.xpose.msra.mxu0 0.0
    %59 = vmatprep.subr.mxu0 0.0
    %60 = vmatpush1.xpose.msra.mxu0 0.0
    %61 = vmatprep.subr.mxu0 0.0
    %62 = vmatpush1.xpose.msra.mxu0 0.0
    %63 = vmatprep.subr.mxu0 0.0
    %64 = vmatpush1.xpose.msra.mxu0 0.0
    %65 = vmatprep.subr.mxu0 0.0
    %66 = vmatpush1.xpose.msra.mxu0 0.0
    %67 = vmatprep.subr.mxu0 0.0
    %68 = vmatpush1.xpose.msra.mxu0 0.0
    %69 = vmatprep.subr.mxu0 0.0
    %70 = vmatpush1.xpose.msra.mxu0 0.0
    %71 = vmatprep.subr.mxu0 0.0
    %72 = vmatpush1.xpose.msra.mxu0 0.0
    %73 = vmatprep.subr.mxu0 0.0
    %74 = vmatpush1.xpose.msra.mxu0 0.0
    %75 = vmatprep.subr.mxu0 0.0
    %76 = vmatpush1.xpose.msra.mxu0 0.0
    %77 = vmatprep.subr.mxu0 0.0
    %78 = vmatpush1.xpose.msra.mxu0 0.0
    %79 = vmatprep.subr.mxu0 0.0
    %80 = vmatpush1.xpose.msra.mxu0 0.0
    %81 = vmatprep.subr.mxu0 0.0
    %82 = vmatpush1.xpose.msra.mxu0 0.0
    %83 = vmatprep.subr.mxu0 0.0
    %84 = vmatpush1.xpose.msra.mxu0 0.0
    %85 = vmatprep.subr.mxu0 0.0
    %86 = vmatpush1.xpose.msra.mxu0 0.0
    %87 = vmatprep.subr.mxu0 0.0
    %88 = vmatpush1.xpose.msra.mxu0 0.0
    %89 = vmatprep.subr.mxu0 0.0
    %90 = vmatpush1.xpose.msra.mxu0 0.0
    %91 = vmatprep.subr.mxu0 0.0
    %92 = vmatpush1.xpose.msra.mxu0 0.0
    %93 = vmatprep.subr.mxu0 0.0
    %94 = vmatpush1.xpose.msra.mxu0 0.0
    %95 = vmatprep.subr.mxu0 0.0
    %96 = vmatpush1.xpose.msra.mxu0 0.0
    %97 = vmatprep.mubr.f32.mxu0 0.0
    %98 = vmatmul.mubr.f32.gmra.mrb[0].mxu0 %v28
    %v99 = vpop.f32.mrb[0].mxu0
    %v100 = vadd.f32 0.0, %v99
    %v101 = vpop.f32.mrb[0].mxu0
    %102 = vdwg.mxu0
    %vm103 = vcmask 9216
    %104 = vst.msk [vmem:[#allocation5] sm:$0x3] %vm103, %v100
    // Predicated region
    $region14: #{tpu_custom_call.1} parent=1 // pred_check
      _
    $region15: #{tpu_custom_call.1} parent=1 // pred_check_branch
      %106 = sbr.rel (0) target = $region17
    $region16: #{tpu_custom_call.1} parent=1 // pred_region
      %s108 = ssub.s32 32, 32
      %109 = vsyncadd [#allocation4], %s108
      %s111 = sshll.u32 [#allocation5], 4
      %s112 = int_to_ptr.vmem [resolvable:$true] %s111
      %114 = dma.vmem_to_hbm [thread:$0]  %s112, 32, %s2, [#allocation4]
    $region17: #{tpu_custom_call.1} parent=1 // pred_fallthru
      _
    // Predicated region
    $region18: #{tpu_custom_call.1} parent=1 // pred_check
      _
    $region19: #{tpu_custom_call.1} parent=1 // pred_check_branch
      %116 = sbr.rel (0) target = $region21
    $region20: #{tpu_custom_call.1} parent=1 // pred_region
      %117 = dma.done [#allocation4], 32
    $region21: #{tpu_custom_call.1} parent=1 // pred_fallthru
      _
    %118 = vsyncpa [#allocation3], 1
    %119 = vsyncpa [#allocation4], 1

</llo_original>
